<compile_context>
chip_gen: v7x
topology: tpu7x:2x2x1
jax: 0.10.0
libtpu: 0.0.40
codegen_flags: <defaults>
</compile_context>

<pallas_src>
import functools

import jax
import jax.numpy as jnp
from jax.experimental import pallas as pl
from jax.experimental.pallas import tpu as pltpu

NEG_SLOPE = 0.2      # GATv2Conv default negative_slope
_MASK = -1e30        # additive softmax mask for non-edges


# ----------------------------- Pallas kernel ------------------------------- #

def _gatv2_kernel(adj_ref, xr_ref, qr_ref, xlt_ref, xlb_ref, ql_ref,
                  attr_ref, bias_ref, *rest,
                  heads, cph, concat, activation, fuse_gru):
    """Masked GATv2 attention + aggregation over one row tile of targets.

    adj_ref : (TM, N) int8   adjacency slab (streamed)
    xr_ref  : (TM, H*C) f32  target-side transform rows (streamed)
    qr_ref  : (TM, heads)    per-head target scores, already * NEG_SLOPE
    xlt_ref : (H*C, N)  f32  source-side transform, transposed (resident)
    xlb_ref : (N, H*C)  bf16 source-side transform for the MXU (resident)
    ql_ref  : (heads, N) f32 per-head source scores, already * NEG_SLOPE
    attr_ref: (heads, cph)   attention vector, already * (1 - NEG_SLOPE)
    """
    if fuse_gru:
        u_ref, hprev_ref, out_ref = rest
    else:
        (out_ref,) = rest

    f32, bf16 = jnp.float32, jnp.bfloat16

    # Additive softmax mask from the int8 slab (edges -> 0, non-edges -> -1e30);
    # computed once per row tile, shared by every head.
    mask_bias = (adj_ref[...].astype(f32) - 1.0) * (-_MASK)        # (TM, N)

    xr = xr_ref[...]                                               # (TM, H*C)
    qr = qr_ref[...]                                               # (TM, heads)
    attr = attr_ref[...]                                           # (heads, cph)

    head_outs = []
    for hh in range(heads):
        lo = hh * cph
        # leaky_relu(z) = NEG_SLOPE*z + (1-NEG_SLOPE)*relu(z):
        # the linear term is a rank-1 outer sum of precomputed per-node scores.
        e = qr[:, hh:hh + 1] + ql_ref[hh:hh + 1, :] + mask_bias    # (TM, N)

        # relu correction: lane-dense source rows -> no sublane->lane relayout.
        for c in range(cph):
            z = xr[:, lo + c:lo + c + 1] + xlt_ref[lo + c:lo + c + 1, :]
            e = e + attr[hh:hh + 1, c:c + 1] * jnp.maximum(z, 0.0)

        # Masked softmax over sources (self-loops => every real row non-empty;
        # masked logits underflow to exactly 0 after exp).
        e = e - jnp.max(e, axis=1, keepdims=True)
        p = jnp.exp(e)
        inv = pl.reciprocal(jnp.sum(p, axis=1, keepdims=True), approx=True)
        alpha = (p * inv).astype(bf16)                             # (TM, N)

        # Aggregate source features on the MXU (bf16 in, f32 accumulation).
        # TODO(synk): for concat=False on v6e/v7x the per-head matmuls could be
        # fused into one (TM, heads*N) x (heads*N, cph) call to fill the MXU.
        head_outs.append(jnp.dot(alpha, xlb_ref[:, lo:lo + cph],
                                 preferred_element_type=f32))      # (TM, cph)

    if concat:
        out = head_outs[0] if heads == 1 else jnp.concatenate(head_outs, axis=1)
    else:
        acc = head_outs[0]
        for t in head_outs[1:]:
            acc = acc + t
        out = acc * (1.0 / heads)

    out = out + bias_ref[...]
    if activation == "sigmoid":
        out = jax.nn.sigmoid(out)
    elif activation == "tanh":
        out = jnp.tanh(out)

    if fuse_gru:  # fused GRU epilogue: h' = u*h + (1-u)*c
        u = u_ref[...]
        out = u * hprev_ref[...] + (1.0 - u) * out

    out_ref[...] = out.astype(out_ref.dtype)


# ------------------------------ JAX wrappers ------------------------------- #

def _vmem_capacity_bytes():
    try:
        return int(pltpu.get_tpu_info().vmem_capacity_bytes)
    except Exception:
        return 64 * 1024 * 1024  # conservative (v7x per-core) fallback


def _pick_tile(n, vmem_bytes):
    """Row-tile over targets.  Whole graph when small; otherwise a
    generation-aware tile (512 on 128-MiB v5e/v6e, 256 on 64-MiB v7x with the
    int8 adjacency), shrunk until the f32 (TM, N) working set fits."""
    if n <= 512:
        return n
    tm = 512 if vmem_bytes >= (100 << 20) else 256
    while tm > 32:
        n_pad = -(-n // tm) * tm
        # ~6 live f32 (TM, N) temporaries + double-buffered int8 adj slab.
        work = 6 * tm * n_pad * 4 + 2 * tm * n_pad
        if work <= vmem_bytes // 2:
            break
        tm //= 2
    return tm


def build_adj(edge_index, n):
    """Dense int8 adjacency mask adj[target, source]; add_self_loops=True."""
    # Note: duplicate (src, dst) edges collapse to one entry (PyG would count
    # each duplicate in the softmax); dense masks cannot express multiplicity.
    src, dst = edge_index[0], edge_index[1]
    adj = jnp.zeros((n, n), jnp.int8).at[dst, src].set(1)
    return jnp.maximum(adj, jnp.eye(n, dtype=jnp.int8))


def gatv2_conv(x, h_feat, adj, params, *, heads, cph, concat, activation,
               fuse_gru=False, u=None, h_prev=None):
    """GATv2Conv on node features [x || h_feat].  The linear transforms and
    per-head linear scores are hoisted to XLA (computed once); the Pallas
    kernel does the O(N^2) masked attention / softmax / aggregation, optionally
    fusing the GRU combine u*h + (1-u)*act(out)."""
    n, fx = x.shape
    hc = heads * cph
    out_dim = hc if concat else cph
    f32, bf16 = jnp.float32, jnp.bfloat16

    vmem_bytes = _vmem_capacity_bytes()
    tm = _pick_tile(n, vmem_bytes)
    n_pad = -(-n // tm) * tm
    pad = n_pad - n

    def prow(a):
        return jnp.pad(a, ((0, pad), (0, 0))) if pad else a

    xp, hp = prow(x), prow(h_feat)
    adj_p = jnp.pad(adj, ((0, pad), (0, pad))) if pad else adj

    # --- Hoisted linear transforms (once, not once per row tile). ----------
    wl, wr = params["w_l"], params["w_r"]
    xl = xp @ wl[:fx] + hp @ wl[fx:] + params["b_l"]          # (Np, H*C) f32
    xr = xp @ wr[:fx] + hp @ wr[fx:] + params["b_r"]          # (Np, H*C) f32

    att = params["att"]                                       # (heads, cph)
    xl3 = xl.reshape(n_pad, heads, cph)
    xr3 = xr.reshape(n_pad, heads, cph)
    ql = (NEG_SLOPE * jnp.einsum("nhc,hc->hn", xl3, att)).astype(f32)  # (H, Np)
    qr = (NEG_SLOPE * jnp.einsum("nhc,hc->nh", xr3, att)).astype(f32)  # (Np, H)
    att_relu = ((1.0 - NEG_SLOPE) * att).astype(f32)          # (heads, cph)
    xl_t = xl.T.astype(f32)                                   # (H*C, Np) lane-dense
    xl_bf = xl.astype(bf16)                                   # (Np, H*C) for MXU

    grid = (n_pad // tm,)

    def rows(ncols):                     # (TM, ncols) slab streamed per step
        return pl.BlockSpec((tm, ncols), lambda i: (i, 0))

    def full(a):                         # whole array resident across the grid
        # TODO(synk): pipeline_mode=pl.Buffered(1) would single-buffer these
        # constant-index operands; left at the default for lowering safety.
        return pl.BlockSpec(a.shape, lambda i: (0, 0))

    operands = [adj_p, xr.astype(f32), qr, xl_t, xl_bf, ql, att_relu,
                params["bias"].astype(f32)]
    in_specs = [rows(n_pad), rows(hc), rows(heads),
                full(xl_t), full(xl_bf), full(ql), full(att_relu),
                full(params["bias"])]
    if fuse_gru:
        assert u is not None and h_prev is not None
        assert h_prev.shape[1] == out_dim
        operands += [prow(u), prow(h_prev)]
        in_specs += [rows(out_dim), rows(out_dim)]

    kernel = functools.partial(_gatv2_kernel, heads=heads, cph=cph,
                               concat=concat, activation=activation,
                               fuse_gru=fuse_gru)
    out = pl.pallas_call(
        kernel,
        out_shape=jax.ShapeDtypeStruct((n_pad, out_dim), jnp.float32),
        grid=grid,
        in_specs=in_specs,
        out_specs=rows(out_dim),
        compiler_params=pltpu.CompilerParams(
            # Row tiles are independent -> shard across v7x's 2 TensorCores.
            dimension_semantics=("parallel",),
            # Generation-aware VMEM budget (≈96 MiB on v5e/v6e, ≈48 MiB on v7x).
            vmem_limit_bytes=max(32 * 1024 * 1024,
                                 min(vmem_bytes * 3 // 4, 112 * 1024 * 1024))),
    )(*operands)
    return out[:n] if pad else out


def init_tgat_params(key, in_channels, out_channels, heads, concat):
    hid = out_channels // heads if concat else out_channels
    fin = in_channels + out_channels

    def conv_params(k, cph):
        ks = jax.random.split(k, 6)
        d = heads * cph
        out_d = heads * cph if concat else cph
        return {
            "w_l": 0.1 * jax.random.normal(ks[0], (fin, d), jnp.float32),
            "b_l": 0.1 * jax.random.normal(ks[1], (1, d), jnp.float32),
            "w_r": 0.1 * jax.random.normal(ks[2], (fin, d), jnp.float32),
            "b_r": 0.1 * jax.random.normal(ks[3], (1, d), jnp.float32),
            "att": 0.1 * jax.random.normal(ks[4], (heads, cph), jnp.float32),
            "bias": 0.1 * jax.random.normal(ks[5], (1, out_d), jnp.float32),
        }

    k1, k2 = jax.random.split(key)
    # conv1: out per head = 2*hid ; conv2: out per head = hid
    return {"conv1": conv_params(k1, 2 * hid), "conv2": conv_params(k2, hid)}


def tgat_cell_forward(x, edge_index, edge_weight, h, params, *,
                      batch_size, out_channels, heads, concat):
    del edge_weight  # accepted but unused, exactly like the PyTorch module
    n = x.shape[0]
    hid = out_channels // heads if concat else out_channels
    adj = build_adj(edge_index, n)                 # int8, shared by both convs

    # ru = sigmoid(conv1([x, h]))
    ru = gatv2_conv(x, h, adj, params["conv1"], heads=heads, cph=2 * hid,
                    concat=concat, activation="sigmoid")          # (N, 2*out)

    # Mirror the module's quirky reshape / chunk exactly (cheap glue).
    ru = ru.reshape(batch_size, -1, 2 * out_channels).reshape(batch_size, -1)
    r, u = jnp.split(ru, 2, axis=1)
    r = r.reshape(batch_size, -1, out_channels).reshape(-1, out_channels)
    u = u.reshape(batch_size, -1, out_channels).reshape(-1, out_channels)

    # h' = u*h + (1-u)*tanh(conv2([x, r*h])) — GRU combine fused into conv2.
    return gatv2_conv(x, r * h, adj, params["conv2"], heads=heads, cph=hid,
                      concat=concat, activation="tanh",
                      fuse_gru=True, u=u, h_prev=h)


# ------------------------- pure-JAX reference (f32) ------------------------ #

def _gatv2_ref(x, h_feat, adj, params, *, heads, cph, concat, activation):
    n = x.shape[0]
    feats = jnp.concatenate([x, h_feat], axis=1)
    xl = feats @ params["w_l"] + params["b_l"]
    xr = feats @ params["w_r"] + params["b_r"]
    xl3 = xl.reshape(n, heads, cph)
    xr3 = xr.reshape(n, heads, cph)
    z = xl3[None, :, :, :] + xr3[:, None, :, :]                 # (tgt, src, h, c)
    e = jnp.einsum("ijhc,hc->ijh", jax.nn.leaky_relu(z, NEG_SLOPE), params["att"])
    e = jnp.where((adj > 0)[:, :, None], e, _MASK)
    alpha = jax.nn.softmax(e, axis=1)
    out = jnp.einsum("ijh,jhc->ihc", alpha, xl3)
    out = out.reshape(n, heads * cph) if concat else out.mean(axis=1)
    out = out + params["bias"]
    if activation == "sigmoid":
        return jax.nn.sigmoid(out)
    if activation == "tanh":
        return jnp.tanh(out)
    return out


def _tgat_cell_ref(x, edge_index, edge_weight, h, params, *,
                   batch_size, out_channels, heads, concat):
    del edge_weight
    n = x.shape[0]
    hid = out_channels // heads if concat else out_channels
    adj = build_adj(edge_index, n)
    ru = _gatv2_ref(x, h, adj, params["conv1"], heads=heads, cph=2 * hid,
                    concat=concat, activation="sigmoid")
    ru = ru.reshape(batch_size, -1, 2 * out_channels).reshape(batch_size, -1)
    r, u = jnp.split(ru, 2, axis=1)
    r = r.reshape(batch_size, -1, out_channels).reshape(-1, out_channels)
    u = u.reshape(batch_size, -1, out_channels).reshape(-1, out_channels)
    c = _gatv2_ref(x, r * h, adj, params["conv2"], heads=heads, cph=hid,
                   concat=concat, activation="tanh")
    return u * h + (1.0 - u) * c


# ---------------------------------- main ----------------------------------- #

if __name__ == "__main__":
    batch_size, nodes_per_graph = 2, 4
    n = batch_size * nodes_per_graph
    in_channels, out_channels, heads, concat = 4, 8, 2, True

    key = jax.random.PRNGKey(0)
    kx, kh, kp = jax.random.split(key, 3)
    x = jax.random.normal(kx, (n, in_channels), jnp.float32)
    h = jax.random.normal(kh, (n, out_channels), jnp.float32)

    # Two small directed graphs (one per batch element), node-disjoint.
    src = jnp.array([0, 1, 2, 3, 1, 2, 4, 5, 6, 7, 5, 6], jnp.int32)
    dst = jnp.array([1, 2, 3, 0, 0, 1, 5, 6, 7, 4, 4, 5], jnp.int32)
    edge_index = jnp.stack([src, dst])
    edge_weight = jnp.ones((src.shape[0],), jnp.float32)  # unused by the module

    params = init_tgat_params(kp, in_channels, out_channels, heads, concat)

    h_new = tgat_cell_forward(x, edge_index, edge_weight, h, params,
                              batch_size=batch_size, out_channels=out_channels,
                              heads=heads, concat=concat)
    h_new = jax.block_until_ready(h_new)

    assert h_new.shape == (n, out_channels), h_new.shape
    assert bool(jnp.all(jnp.isfinite(h_new)))

    # Loose tolerance: kernel uses bf16 MXU operands + approx reciprocal.
    h_ref = _tgat_cell_ref(x, edge_index, edge_weight, h, params,
                           batch_size=batch_size, out_channels=out_channels,
                           heads=heads, concat=concat)
    err = float(jnp.max(jnp.abs(h_new - h_ref)))
    assert err < 5e-2, f"max abs diff vs reference too large: {err}"

    print("KERNEL_OK")
</pallas_src>

<mosaic_0001>
module attributes {stable_mosaic.version = 11 : i64} {
  func.func @_gatv2_kernel(%arg0: i32, %arg1: memref<8x8xi8, #tpu.memory_space<vmem>>, %arg2: memref<8x16xf32, #tpu.memory_space<vmem>>, %arg3: memref<8x2xf32, #tpu.memory_space<vmem>>, %arg4: memref<16x8xf32, #tpu.memory_space<vmem>>, %arg5: memref<8x16xbf16, #tpu.memory_space<vmem>>, %arg6: memref<2x8xf32, #tpu.memory_space<vmem>>, %arg7: memref<2x8xf32, #tpu.memory_space<vmem>>, %arg8: memref<1x16xf32, #tpu.memory_space<vmem>>, %arg9: memref<8x16xf32, #tpu.memory_space<vmem>>) attributes {dimension_semantics = [#tpu.dimension_semantics<parallel>], iteration_bounds = array<i64: 1>, scalar_prefetch = 0 : i64, scratch_operands = 0 : i64, tpu.core_type = #tpu.core_type<tc>, window_params = [{transform_indices = @transform_0, window_bounds = array<i64: 8, 8>}, {transform_indices = @transform_1, window_bounds = array<i64: 8, 16>}, {transform_indices = @transform_2, window_bounds = array<i64: 8, 2>}, {pipeline_mode = #tpu.pipeline_mode<synchronous>, transform_indices = @transform_3, window_bounds = array<i64: 16, 8>}, {pipeline_mode = #tpu.pipeline_mode<synchronous>, transform_indices = @transform_4, window_bounds = array<i64: 8, 16>}, {pipeline_mode = #tpu.pipeline_mode<synchronous>, transform_indices = @transform_5, window_bounds = array<i64: 2, 8>}, {pipeline_mode = #tpu.pipeline_mode<synchronous>, transform_indices = @transform_6, window_bounds = array<i64: 2, 8>}, {pipeline_mode = #tpu.pipeline_mode<synchronous>, transform_indices = @transform_7, window_bounds = array<i64: 1, 16>}, {transform_indices = @transform_8, window_bounds = array<i64: 8, 16>}]} {
    %c0 = arith.constant 0 : index
    %c0_0 = arith.constant 0 : index
    %0 = vector.load %arg1[%c0, %c0_0] : memref<8x8xi8, #tpu.memory_space<vmem>>, vector<8x8xi8>
    %1 = arith.sitofp %0 : vector<8x8xi8> to vector<8x8xf32>
    %cst = arith.constant 1.000000e+00 : f32
    %2 = vector.broadcast %cst : f32 to vector<8x8xf32>
    %3 = arith.subf %1, %2 : vector<8x8xf32>
    %cst_1 = arith.constant 1.000000e+30 : f32
    %4 = vector.broadcast %cst_1 : f32 to vector<8x8xf32>
    %5 = arith.mulf %3, %4 : vector<8x8xf32>
    %c0_2 = arith.constant 0 : index
    %c0_3 = arith.constant 0 : index
    %6 = vector.load %arg2[%c0_2, %c0_3] : memref<8x16xf32, #tpu.memory_space<vmem>>, vector<8x16xf32>
    %c0_4 = arith.constant 0 : index
    %c0_5 = arith.constant 0 : index
    %7 = vector.load %arg3[%c0_4, %c0_5] : memref<8x2xf32, #tpu.memory_space<vmem>>, vector<8x2xf32>
    %c0_6 = arith.constant 0 : index
    %c0_7 = arith.constant 0 : index
    %8 = vector.load %arg7[%c0_6, %c0_7] : memref<2x8xf32, #tpu.memory_space<vmem>>, vector<2x8xf32>
    %9 = vector.extract_strided_slice %7 {offsets = [0, 0], sizes = [8, 1], strides = [1, 1]} : vector<8x2xf32> to vector<8x1xf32>
    %c0_8 = arith.constant 0 : index
    %c0_9 = arith.constant 0 : index
    %10 = vector.load %arg6[%c0_8, %c0_9] : memref<2x8xf32, #tpu.memory_space<vmem>>, vector<1x8xf32>
    %11 = vector.broadcast %9 : vector<8x1xf32> to vector<8x8xf32>
    %12 = vector.broadcast %10 : vector<1x8xf32> to vector<8x8xf32>
    %13 = arith.addf %11, %12 : vector<8x8xf32>
    %14 = arith.addf %13, %5 : vector<8x8xf32>
    %15 = vector.extract_strided_slice %6 {offsets = [0, 0], sizes = [8, 1], strides = [1, 1]} : vector<8x16xf32> to vector<8x1xf32>
    %c0_10 = arith.constant 0 : index
    %c0_11 = arith.constant 0 : index
    %16 = vector.load %arg4[%c0_10, %c0_11] : memref<16x8xf32, #tpu.memory_space<vmem>>, vector<1x8xf32>
    %17 = vector.broadcast %15 : vector<8x1xf32> to vector<8x8xf32>
    %18 = vector.broadcast %16 : vector<1x8xf32> to vector<8x8xf32>
    %19 = arith.addf %17, %18 : vector<8x8xf32>
    %20 = vector.extract_strided_slice %8 {offsets = [0, 0], sizes = [1, 1], strides = [1, 1]} : vector<2x8xf32> to vector<1x1xf32>
    %cst_12 = arith.constant 0.000000e+00 : f32
    %21 = vector.broadcast %cst_12 : f32 to vector<8x8xf32>
    %22 = arith.maximumf %19, %21 : vector<8x8xf32>
    %23 = vector.broadcast %20 : vector<1x1xf32> to vector<8x8xf32>
    %24 = arith.mulf %23, %22 : vector<8x8xf32>
    %25 = arith.addf %14, %24 : vector<8x8xf32>
    %26 = vector.extract_strided_slice %6 {offsets = [0, 1], sizes = [8, 1], strides = [1, 1]} : vector<8x16xf32> to vector<8x1xf32>
    %c1 = arith.constant 1 : index
    %c0_13 = arith.constant 0 : index
    %27 = vector.load %arg4[%c1, %c0_13] : memref<16x8xf32, #tpu.memory_space<vmem>>, vector<1x8xf32>
    %28 = vector.broadcast %26 : vector<8x1xf32> to vector<8x8xf32>
    %29 = vector.broadcast %27 : vector<1x8xf32> to vector<8x8xf32>
    %30 = arith.addf %28, %29 : vector<8x8xf32>
    %31 = vector.extract_strided_slice %8 {offsets = [0, 1], sizes = [1, 1], strides = [1, 1]} : vector<2x8xf32> to vector<1x1xf32>
    %cst_14 = arith.constant 0.000000e+00 : f32
    %32 = vector.broadcast %cst_14 : f32 to vector<8x8xf32>
    %33 = arith.maximumf %30, %32 : vector<8x8xf32>
    %34 = vector.broadcast %31 : vector<1x1xf32> to vector<8x8xf32>
    %35 = arith.mulf %34, %33 : vector<8x8xf32>
    %36 = arith.addf %25, %35 : vector<8x8xf32>
    %37 = vector.extract_strided_slice %6 {offsets = [0, 2], sizes = [8, 1], strides = [1, 1]} : vector<8x16xf32> to vector<8x1xf32>
    %c2 = arith.constant 2 : index
    %c0_15 = arith.constant 0 : index
    %38 = vector.load %arg4[%c2, %c0_15] : memref<16x8xf32, #tpu.memory_space<vmem>>, vector<1x8xf32>
    %39 = vector.broadcast %37 : vector<8x1xf32> to vector<8x8xf32>
    %40 = vector.broadcast %38 : vector<1x8xf32> to vector<8x8xf32>
    %41 = arith.addf %39, %40 : vector<8x8xf32>
    %42 = vector.extract_strided_slice %8 {offsets = [0, 2], sizes = [1, 1], strides = [1, 1]} : vector<2x8xf32> to vector<1x1xf32>
    %cst_16 = arith.constant 0.000000e+00 : f32
    %43 = vector.broadcast %cst_16 : f32 to vector<8x8xf32>
    %44 = arith.maximumf %41, %43 : vector<8x8xf32>
    %45 = vector.broadcast %42 : vector<1x1xf32> to vector<8x8xf32>
    %46 = arith.mulf %45, %44 : vector<8x8xf32>
    %47 = arith.addf %36, %46 : vector<8x8xf32>
    %48 = vector.extract_strided_slice %6 {offsets = [0, 3], sizes = [8, 1], strides = [1, 1]} : vector<8x16xf32> to vector<8x1xf32>
    %c3 = arith.constant 3 : index
    %c0_17 = arith.constant 0 : index
    %49 = vector.load %arg4[%c3, %c0_17] : memref<16x8xf32, #tpu.memory_space<vmem>>, vector<1x8xf32>
    %50 = vector.broadcast %48 : vector<8x1xf32> to vector<8x8xf32>
    %51 = vector.broadcast %49 : vector<1x8xf32> to vector<8x8xf32>
    %52 = arith.addf %50, %51 : vector<8x8xf32>
    %53 = vector.extract_strided_slice %8 {offsets = [0, 3], sizes = [1, 1], strides = [1, 1]} : vector<2x8xf32> to vector<1x1xf32>
    %cst_18 = arith.constant 0.000000e+00 : f32
    %54 = vector.broadcast %cst_18 : f32 to vector<8x8xf32>
    %55 = arith.maximumf %52, %54 : vector<8x8xf32>
    %56 = vector.broadcast %53 : vector<1x1xf32> to vector<8x8xf32>
    %57 = arith.mulf %56, %55 : vector<8x8xf32>
    %58 = arith.addf %47, %57 : vector<8x8xf32>
    %59 = vector.extract_strided_slice %6 {offsets = [0, 4], sizes = [8, 1], strides = [1, 1]} : vector<8x16xf32> to vector<8x1xf32>
    %c4 = arith.constant 4 : index
    %c0_19 = arith.constant 0 : index
    %60 = vector.load %arg4[%c4, %c0_19] : memref<16x8xf32, #tpu.memory_space<vmem>>, vector<1x8xf32>
    %61 = vector.broadcast %59 : vector<8x1xf32> to vector<8x8xf32>
    %62 = vector.broadcast %60 : vector<1x8xf32> to vector<8x8xf32>
    %63 = arith.addf %61, %62 : vector<8x8xf32>
    %64 = vector.extract_strided_slice %8 {offsets = [0, 4], sizes = [1, 1], strides = [1, 1]} : vector<2x8xf32> to vector<1x1xf32>
    %cst_20 = arith.constant 0.000000e+00 : f32
    %65 = vector.broadcast %cst_20 : f32 to vector<8x8xf32>
    %66 = arith.maximumf %63, %65 : vector<8x8xf32>
    %67 = vector.broadcast %64 : vector<1x1xf32> to vector<8x8xf32>
    %68 = arith.mulf %67, %66 : vector<8x8xf32>
    %69 = arith.addf %58, %68 : vector<8x8xf32>
    %70 = vector.extract_strided_slice %6 {offsets = [0, 5], sizes = [8, 1], strides = [1, 1]} : vector<8x16xf32> to vector<8x1xf32>
    %c5 = arith.constant 5 : index
    %c0_21 = arith.constant 0 : index
    %71 = vector.load %arg4[%c5, %c0_21] : memref<16x8xf32, #tpu.memory_space<vmem>>, vector<1x8xf32>
    %72 = vector.broadcast %70 : vector<8x1xf32> to vector<8x8xf32>
    %73 = vector.broadcast %71 : vector<1x8xf32> to vector<8x8xf32>
    %74 = arith.addf %72, %73 : vector<8x8xf32>
    %75 = vector.extract_strided_slice %8 {offsets = [0, 5], sizes = [1, 1], strides = [1, 1]} : vector<2x8xf32> to vector<1x1xf32>
    %cst_22 = arith.constant 0.000000e+00 : f32
    %76 = vector.broadcast %cst_22 : f32 to vector<8x8xf32>
    %77 = arith.maximumf %74, %76 : vector<8x8xf32>
    %78 = vector.broadcast %75 : vector<1x1xf32> to vector<8x8xf32>
    %79 = arith.mulf %78, %77 : vector<8x8xf32>
    %80 = arith.addf %69, %79 : vector<8x8xf32>
    %81 = vector.extract_strided_slice %6 {offsets = [0, 6], sizes = [8, 1], strides = [1, 1]} : vector<8x16xf32> to vector<8x1xf32>
    %c6 = arith.constant 6 : index
    %c0_23 = arith.constant 0 : index
    %82 = vector.load %arg4[%c6, %c0_23] : memref<16x8xf32, #tpu.memory_space<vmem>>, vector<1x8xf32>
    %83 = vector.broadcast %81 : vector<8x1xf32> to vector<8x8xf32>
    %84 = vector.broadcast %82 : vector<1x8xf32> to vector<8x8xf32>
    %85 = arith.addf %83, %84 : vector<8x8xf32>
    %86 = vector.extract_strided_slice %8 {offsets = [0, 6], sizes = [1, 1], strides = [1, 1]} : vector<2x8xf32> to vector<1x1xf32>
    %cst_24 = arith.constant 0.000000e+00 : f32
    %87 = vector.broadcast %cst_24 : f32 to vector<8x8xf32>
    %88 = arith.maximumf %85, %87 : vector<8x8xf32>
    %89 = vector.broadcast %86 : vector<1x1xf32> to vector<8x8xf32>
    %90 = arith.mulf %89, %88 : vector<8x8xf32>
    %91 = arith.addf %80, %90 : vector<8x8xf32>
    %92 = vector.extract_strided_slice %6 {offsets = [0, 7], sizes = [8, 1], strides = [1, 1]} : vector<8x16xf32> to vector<8x1xf32>
    %c7 = arith.constant 7 : index
    %c0_25 = arith.constant 0 : index
    %93 = vector.load %arg4[%c7, %c0_25] : memref<16x8xf32, #tpu.memory_space<vmem>>, vector<1x8xf32>
    %94 = vector.broadcast %92 : vector<8x1xf32> to vector<8x8xf32>
    %95 = vector.broadcast %93 : vector<1x8xf32> to vector<8x8xf32>
    %96 = arith.addf %94, %95 : vector<8x8xf32>
    %97 = vector.extract_strided_slice %8 {offsets = [0, 7], sizes = [1, 1], strides = [1, 1]} : vector<2x8xf32> to vector<1x1xf32>
    %cst_26 = arith.constant 0.000000e+00 : f32
    %98 = vector.broadcast %cst_26 : f32 to vector<8x8xf32>
    %99 = arith.maximumf %96, %98 : vector<8x8xf32>
    %100 = vector.broadcast %97 : vector<1x1xf32> to vector<8x8xf32>
    %101 = arith.mulf %100, %99 : vector<8x8xf32>
    %102 = arith.addf %91, %101 : vector<8x8xf32>
    %cst_27 = arith.constant dense<0xFF800000> : vector<8xf32>
    %103 = vector.multi_reduction <maximumf>, %102, %cst_27 [1] : vector<8x8xf32> to vector<8xf32>
    %104 = vector.shape_cast %103 : vector<8xf32> to vector<8x1xf32>
    %105 = vector.broadcast %104 : vector<8x1xf32> to vector<8x8xf32>
    %106 = arith.subf %102, %105 : vector<8x8xf32>
    %107 = math.exp %106 : vector<8x8xf32>
    %cst_28 = arith.constant dense<0.000000e+00> : vector<8xf32>
    %108 = vector.multi_reduction <add>, %107, %cst_28 [1] : vector<8x8xf32> to vector<8xf32>
    %109 = vector.shape_cast %108 : vector<8xf32> to vector<8x1xf32>
    %110 = tpu.reciprocal %109 {approx = true} : vector<8x1xf32> -> vector<8x1xf32>
    %111 = vector.broadcast %110 : vector<8x1xf32> to vector<8x8xf32>
    %112 = arith.mulf %107, %111 : vector<8x8xf32>
    %113 = arith.truncf %112 : vector<8x8xf32> to vector<8x8xbf16>
    %c0_29 = arith.constant 0 : index
    %c0_30 = arith.constant 0 : index
    %114 = vector.load %arg5[%c0_29, %c0_30] : memref<8x16xbf16, #tpu.memory_space<vmem>>, vector<8x8xbf16>
    %cst_31 = arith.constant dense<0.000000e+00> : vector<8x8xf32>
    %115 = tpu.matmul %113, %114, %cst_31 {dimension_numbers = #tpu.dot_dimension_numbers<[1], [0], [0], [1], [0, 0, 1, 1], [], []>} : vector<8x8xbf16>, vector<8x8xbf16>, vector<8x8xf32> -> vector<8x8xf32>
    %116 = vector.extract_strided_slice %7 {offsets = [0, 1], sizes = [8, 1], strides = [1, 1]} : vector<8x2xf32> to vector<8x1xf32>
    %c1_32 = arith.constant 1 : index
    %c0_33 = arith.constant 0 : index
    %117 = vector.load %arg6[%c1_32, %c0_33] : memref<2x8xf32, #tpu.memory_space<vmem>>, vector<1x8xf32>
    %118 = vector.broadcast %116 : vector<8x1xf32> to vector<8x8xf32>
    %119 = vector.broadcast %117 : vector<1x8xf32> to vector<8x8xf32>
    %120 = arith.addf %118, %119 : vector<8x8xf32>
    %121 = arith.addf %120, %5 : vector<8x8xf32>
    %122 = vector.extract_strided_slice %6 {offsets = [0, 8], sizes = [8, 1], strides = [1, 1]} : vector<8x16xf32> to vector<8x1xf32>
    %c8 = arith.constant 8 : index
    %c0_34 = arith.constant 0 : index
    %123 = vector.load %arg4[%c8, %c0_34] : memref<16x8xf32, #tpu.memory_space<vmem>>, vector<1x8xf32>
    %124 = vector.broadcast %122 : vector<8x1xf32> to vector<8x8xf32>
    %125 = vector.broadcast %123 : vector<1x8xf32> to vector<8x8xf32>
    %126 = arith.addf %124, %125 : vector<8x8xf32>
    %127 = vector.extract_strided_slice %8 {offsets = [1, 0], sizes = [1, 1], strides = [1, 1]} : vector<2x8xf32> to vector<1x1xf32>
    %cst_35 = arith.constant 0.000000e+00 : f32
    %128 = vector.broadcast %cst_35 : f32 to vector<8x8xf32>
    %129 = arith.maximumf %126, %128 : vector<8x8xf32>
    %130 = vector.broadcast %127 : vector<1x1xf32> to vector<8x8xf32>
    %131 = arith.mulf %130, %129 : vector<8x8xf32>
    %132 = arith.addf %121, %131 : vector<8x8xf32>
    %133 = vector.extract_strided_slice %6 {offsets = [0, 9], sizes = [8, 1], strides = [1, 1]} : vector<8x16xf32> to vector<8x1xf32>
    %c9 = arith.constant 9 : index
    %c0_36 = arith.constant 0 : index
    %134 = vector.load %arg4[%c9, %c0_36] : memref<16x8xf32, #tpu.memory_space<vmem>>, vector<1x8xf32>
    %135 = vector.broadcast %133 : vector<8x1xf32> to vector<8x8xf32>
    %136 = vector.broadcast %134 : vector<1x8xf32> to vector<8x8xf32>
    %137 = arith.addf %135, %136 : vector<8x8xf32>
    %138 = vector.extract_strided_slice %8 {offsets = [1, 1], sizes = [1, 1], strides = [1, 1]} : vector<2x8xf32> to vector<1x1xf32>
    %cst_37 = arith.constant 0.000000e+00 : f32
    %139 = vector.broadcast %cst_37 : f32 to vector<8x8xf32>
    %140 = arith.maximumf %137, %139 : vector<8x8xf32>
    %141 = vector.broadcast %138 : vector<1x1xf32> to vector<8x8xf32>
    %142 = arith.mulf %141, %140 : vector<8x8xf32>
    %143 = arith.addf %132, %142 : vector<8x8xf32>
    %144 = vector.extract_strided_slice %6 {offsets = [0, 10], sizes = [8, 1], strides = [1, 1]} : vector<8x16xf32> to vector<8x1xf32>
    %c10 = arith.constant 10 : index
    %c0_38 = arith.constant 0 : index
    %145 = vector.load %arg4[%c10, %c0_38] : memref<16x8xf32, #tpu.memory_space<vmem>>, vector<1x8xf32>
    %146 = vector.broadcast %144 : vector<8x1xf32> to vector<8x8xf32>
    %147 = vector.broadcast %145 : vector<1x8xf32> to vector<8x8xf32>
    %148 = arith.addf %146, %147 : vector<8x8xf32>
    %149 = vector.extract_strided_slice %8 {offsets = [1, 2], sizes = [1, 1], strides = [1, 1]} : vector<2x8xf32> to vector<1x1xf32>
    %cst_39 = arith.constant 0.000000e+00 : f32
    %150 = vector.broadcast %cst_39 : f32 to vector<8x8xf32>
    %151 = arith.maximumf %148, %150 : vector<8x8xf32>
    %152 = vector.broadcast %149 : vector<1x1xf32> to vector<8x8xf32>
    %153 = arith.mulf %152, %151 : vector<8x8xf32>
    %154 = arith.addf %143, %153 : vector<8x8xf32>
    %155 = vector.extract_strided_slice %6 {offsets = [0, 11], sizes = [8, 1], strides = [1, 1]} : vector<8x16xf32> to vector<8x1xf32>
    %c11 = arith.constant 11 : index
    %c0_40 = arith.constant 0 : index
    %156 = vector.load %arg4[%c11, %c0_40] : memref<16x8xf32, #tpu.memory_space<vmem>>, vector<1x8xf32>
    %157 = vector.broadcast %155 : vector<8x1xf32> to vector<8x8xf32>
    %158 = vector.broadcast %156 : vector<1x8xf32> to vector<8x8xf32>
    %159 = arith.addf %157, %158 : vector<8x8xf32>
    %160 = vector.extract_strided_slice %8 {offsets = [1, 3], sizes = [1, 1], strides = [1, 1]} : vector<2x8xf32> to vector<1x1xf32>
    %cst_41 = arith.constant 0.000000e+00 : f32
    %161 = vector.broadcast %cst_41 : f32 to vector<8x8xf32>
    %162 = arith.maximumf %159, %161 : vector<8x8xf32>
    %163 = vector.broadcast %160 : vector<1x1xf32> to vector<8x8xf32>
    %164 = arith.mulf %163, %162 : vector<8x8xf32>
    %165 = arith.addf %154, %164 : vector<8x8xf32>
    %166 = vector.extract_strided_slice %6 {offsets = [0, 12], sizes = [8, 1], strides = [1, 1]} : vector<8x16xf32> to vector<8x1xf32>
    %c12 = arith.constant 12 : index
    %c0_42 = arith.constant 0 : index
    %167 = vector.load %arg4[%c12, %c0_42] : memref<16x8xf32, #tpu.memory_space<vmem>>, vector<1x8xf32>
    %168 = vector.broadcast %166 : vector<8x1xf32> to vector<8x8xf32>
    %169 = vector.broadcast %167 : vector<1x8xf32> to vector<8x8xf32>
    %170 = arith.addf %168, %169 : vector<8x8xf32>
    %171 = vector.extract_strided_slice %8 {offsets = [1, 4], sizes = [1, 1], strides = [1, 1]} : vector<2x8xf32> to vector<1x1xf32>
    %cst_43 = arith.constant 0.000000e+00 : f32
    %172 = vector.broadcast %cst_43 : f32 to vector<8x8xf32>
    %173 = arith.maximumf %170, %172 : vector<8x8xf32>
    %174 = vector.broadcast %171 : vector<1x1xf32> to vector<8x8xf32>
    %175 = arith.mulf %174, %173 : vector<8x8xf32>
    %176 = arith.addf %165, %175 : vector<8x8xf32>
    %177 = vector.extract_strided_slice %6 {offsets = [0, 13], sizes = [8, 1], strides = [1, 1]} : vector<8x16xf32> to vector<8x1xf32>
    %c13 = arith.constant 13 : index
    %c0_44 = arith.constant 0 : index
    %178 = vector.load %arg4[%c13, %c0_44] : memref<16x8xf32, #tpu.memory_space<vmem>>, vector<1x8xf32>
    %179 = vector.broadcast %177 : vector<8x1xf32> to vector<8x8xf32>
    %180 = vector.broadcast %178 : vector<1x8xf32> to vector<8x8xf32>
    %181 = arith.addf %179, %180 : vector<8x8xf32>
    %182 = vector.extract_strided_slice %8 {offsets = [1, 5], sizes = [1, 1], strides = [1, 1]} : vector<2x8xf32> to vector<1x1xf32>
    %cst_45 = arith.constant 0.000000e+00 : f32
    %183 = vector.broadcast %cst_45 : f32 to vector<8x8xf32>
    %184 = arith.maximumf %181, %183 : vector<8x8xf32>
    %185 = vector.broadcast %182 : vector<1x1xf32> to vector<8x8xf32>
    %186 = arith.mulf %185, %184 : vector<8x8xf32>
    %187 = arith.addf %176, %186 : vector<8x8xf32>
    %188 = vector.extract_strided_slice %6 {offsets = [0, 14], sizes = [8, 1], strides = [1, 1]} : vector<8x16xf32> to vector<8x1xf32>
    %c14 = arith.constant 14 : index
    %c0_46 = arith.constant 0 : index
    %189 = vector.load %arg4[%c14, %c0_46] : memref<16x8xf32, #tpu.memory_space<vmem>>, vector<1x8xf32>
    %190 = vector.broadcast %188 : vector<8x1xf32> to vector<8x8xf32>
    %191 = vector.broadcast %189 : vector<1x8xf32> to vector<8x8xf32>
    %192 = arith.addf %190, %191 : vector<8x8xf32>
    %193 = vector.extract_strided_slice %8 {offsets = [1, 6], sizes = [1, 1], strides = [1, 1]} : vector<2x8xf32> to vector<1x1xf32>
    %cst_47 = arith.constant 0.000000e+00 : f32
    %194 = vector.broadcast %cst_47 : f32 to vector<8x8xf32>
    %195 = arith.maximumf %192, %194 : vector<8x8xf32>
    %196 = vector.broadcast %193 : vector<1x1xf32> to vector<8x8xf32>
    %197 = arith.mulf %196, %195 : vector<8x8xf32>
    %198 = arith.addf %187, %197 : vector<8x8xf32>
    %199 = vector.extract_strided_slice %6 {offsets = [0, 15], sizes = [8, 1], strides = [1, 1]} : vector<8x16xf32> to vector<8x1xf32>
    %c15 = arith.constant 15 : index
    %c0_48 = arith.constant 0 : index
    %200 = vector.load %arg4[%c15, %c0_48] : memref<16x8xf32, #tpu.memory_space<vmem>>, vector<1x8xf32>
    %201 = vector.broadcast %199 : vector<8x1xf32> to vector<8x8xf32>
    %202 = vector.broadcast %200 : vector<1x8xf32> to vector<8x8xf32>
    %203 = arith.addf %201, %202 : vector<8x8xf32>
    %204 = vector.extract_strided_slice %8 {offsets = [1, 7], sizes = [1, 1], strides = [1, 1]} : vector<2x8xf32> to vector<1x1xf32>
    %cst_49 = arith.constant 0.000000e+00 : f32
    %205 = vector.broadcast %cst_49 : f32 to vector<8x8xf32>
    %206 = arith.maximumf %203, %205 : vector<8x8xf32>
    %207 = vector.broadcast %204 : vector<1x1xf32> to vector<8x8xf32>
    %208 = arith.mulf %207, %206 : vector<8x8xf32>
    %209 = arith.addf %198, %208 : vector<8x8xf32>
    %cst_50 = arith.constant dense<0xFF800000> : vector<8xf32>
    %210 = vector.multi_reduction <maximumf>, %209, %cst_50 [1] : vector<8x8xf32> to vector<8xf32>
    %211 = vector.shape_cast %210 : vector<8xf32> to vector<8x1xf32>
    %212 = vector.broadcast %211 : vector<8x1xf32> to vector<8x8xf32>
    %213 = arith.subf %209, %212 : vector<8x8xf32>
    %214 = math.exp %213 : vector<8x8xf32>
    %cst_51 = arith.constant dense<0.000000e+00> : vector<8xf32>
    %215 = vector.multi_reduction <add>, %214, %cst_51 [1] : vector<8x8xf32> to vector<8xf32>
    %216 = vector.shape_cast %215 : vector<8xf32> to vector<8x1xf32>
    %217 = tpu.reciprocal %216 {approx = true} : vector<8x1xf32> -> vector<8x1xf32>
    %218 = vector.broadcast %217 : vector<8x1xf32> to vector<8x8xf32>
    %219 = arith.mulf %214, %218 : vector<8x8xf32>
    %220 = arith.truncf %219 : vector<8x8xf32> to vector<8x8xbf16>
    %c0_52 = arith.constant 0 : index
    %c8_53 = arith.constant 8 : index
    %221 = vector.load %arg5[%c0_52, %c8_53] : memref<8x16xbf16, #tpu.memory_space<vmem>>, vector<8x8xbf16>
    %cst_54 = arith.constant dense<0.000000e+00> : vector<8x8xf32>
    %222 = tpu.matmul %220, %221, %cst_54 {dimension_numbers = #tpu.dot_dimension_numbers<[1], [0], [0], [1], [0, 0, 1, 1], [], []>} : vector<8x8xbf16>, vector<8x8xbf16>, vector<8x8xf32> -> vector<8x8xf32>
    %223 = tpu.concatenate %115, %222 in 1 : vector<8x8xf32>, vector<8x8xf32> -> vector<8x16xf32>
    %c0_55 = arith.constant 0 : index
    %c0_56 = arith.constant 0 : index
    %224 = vector.load %arg8[%c0_55, %c0_56] : memref<1x16xf32, #tpu.memory_space<vmem>>, vector<1x16xf32>
    %225 = vector.broadcast %224 : vector<1x16xf32> to vector<8x16xf32>
    %226 = arith.addf %223, %225 : vector<8x16xf32>
    %227 = arith.negf %226 : vector<8x16xf32>
    %228 = math.exp %227 : vector<8x16xf32>
    %cst_57 = arith.constant 1.000000e+00 : f32
    %229 = vector.broadcast %cst_57 : f32 to vector<8x16xf32>
    %230 = arith.addf %229, %228 : vector<8x16xf32>
    %231 = arith.divf %229, %230 : vector<8x16xf32>
    %c0_58 = arith.constant 0 : index
    %c0_59 = arith.constant 0 : index
    %232 = vector.load %arg9[%c0_58, %c0_59] : memref<8x16xf32, #tpu.memory_space<vmem>>, vector<8x16xf32>
    tpu.vector_store %arg9[%c0_58, %c0_59], %231 {strides = array<i32>} : memref<8x16xf32, #tpu.memory_space<vmem>>, vector<8x16xf32>,
    return
  }
  func.func @transform_0(%arg0: i32) -> (i32, i32) {
    %c0_i32 = arith.constant 0 : i32
    %c0_i32_0 = arith.constant 0 : i32
    return %arg0, %c0_i32 : i32, i32
  }
  func.func @transform_1(%arg0: i32) -> (i32, i32) {
    %c0_i32 = arith.constant 0 : i32
    %c0_i32_0 = arith.constant 0 : i32
    return %arg0, %c0_i32 : i32, i32
  }
  func.func @transform_2(%arg0: i32) -> (i32, i32) {
    %c0_i32 = arith.constant 0 : i32
    %c0_i32_0 = arith.constant 0 : i32
    return %arg0, %c0_i32 : i32, i32
  }
  func.func @transform_3(%arg0: i32) -> (i32, i32) {
    %c0_i32 = arith.constant 0 : i32
    %c0_i32_0 = arith.constant 0 : i32
    %c0_i32_1 = arith.constant 0 : i32
    return %c0_i32, %c0_i32_0 : i32, i32
  }
  func.func @transform_4(%arg0: i32) -> (i32, i32) {
    %c0_i32 = arith.constant 0 : i32
    %c0_i32_0 = arith.constant 0 : i32
    %c0_i32_1 = arith.constant 0 : i32
    return %c0_i32, %c0_i32_0 : i32, i32
  }
  func.func @transform_5(%arg0: i32) -> (i32, i32) {
    %c0_i32 = arith.constant 0 : i32
    %c0_i32_0 = arith.constant 0 : i32
    %c0_i32_1 = arith.constant 0 : i32
    return %c0_i32, %c0_i32_0 : i32, i32
  }
  func.func @transform_6(%arg0: i32) -> (i32, i32) {
    %c0_i32 = arith.constant 0 : i32
    %c0_i32_0 = arith.constant 0 : i32
    %c0_i32_1 = arith.constant 0 : i32
    return %c0_i32, %c0_i32_0 : i32, i32
  }
  func.func @transform_7(%arg0: i32) -> (i32, i32) {
    %c0_i32 = arith.constant 0 : i32
    %c0_i32_0 = arith.constant 0 : i32
    %c0_i32_1 = arith.constant 0 : i32
    return %c0_i32, %c0_i32_0 : i32, i32
  }
  func.func @transform_8(%arg0: i32) -> (i32, i32) {
    %c0_i32 = arith.constant 0 : i32
    %c0_i32_0 = arith.constant 0 : i32
    return %arg0, %c0_i32 : i32, i32
  }
}

</mosaic_0001>

<llo_original>
// kernel: tpu_custom_call.1
$region0: #{tpu_custom_call.1}
  #allocation0 [shape = 'u32[]', space=smem, size = 0x4, offset = 0x4, fixed_abs, tag = 'smem constant byte address 0x4 - core index']
  #allocation1 [shape = 'u32[144,128]{1,0:T(1,128)}', space=vmem, size = 0x12000, scoped, tag = 'internal scratch']
  %s0 = inlined_call_operand.vmem [shape: s8[8,8], index: 0, kind: input, shape index: {}]
  %s1 = inlined_call_operand.vmem [shape: f32[8,16], index: 1, kind: input, shape index: {}]
  %s2 = inlined_call_operand.vmem [shape: f32[8,2], index: 2, kind: input, shape index: {}]
  %s3 = inlined_call_operand.vmem [shape: f32[16,8], index: 3, kind: input, shape index: {}]
  %s4 = inlined_call_operand.vmem [shape: bf16[8,16], index: 4, kind: input, shape index: {}]
  %s5 = inlined_call_operand.vmem [shape: f32[2,8], index: 5, kind: input, shape index: {}]
  %s6 = inlined_call_operand.vmem [shape: f32[2,8], index: 6, kind: input, shape index: {}]
  %s7 = inlined_call_operand.vmem [shape: f32[1,16], index: 7, kind: input, shape index: {}]
  %s8 = inlined_call_operand.hbm [shape: f32[8,16], index: 8, kind: output, shape index: {}]
  %s9 = sld [smem:[#allocation0]]
  $region42: #{tpu_custom_call.1} parent=0
    _
  %s11 = ssub.s32 1, %s9
  %s12 = scalar_select 0, %s11, %s9
  $region1: #{tpu_custom_call.1} parent=0
    #allocation2 [shape = 'u8[4096]{0}', space=vmem, size = 0x1000, scoped, tag = 'output window, operand 0, single buffered']
    #allocation3 [shape = 's32[1]{0}', space=sflag, size = 0x4, scoped, tag = 'scoped memory for tpu_custom_call.1']
    %13 = vsyncpa [#allocation3], 0
    // Predicated region
    $region2: #{tpu_custom_call.1} parent=1 // pred_check
      _
    $region3: #{tpu_custom_call.1} parent=1 // pred_check_branch
      %15 = sbr.rel (0) target = $region5
    $region4: #{tpu_custom_call.1} parent=1 // pred_region
      _
    $region5: #{tpu_custom_call.1} parent=1 // pred_fallthru
      _
    // Predicated region
    $region6: #{tpu_custom_call.1} parent=1 // pred_check
      _
    $region7: #{tpu_custom_call.1} parent=1 // pred_check_branch
      %17 = sbr.rel (0) target = $region9
    $region8: #{tpu_custom_call.1} parent=1 // pred_region
      _
    $region9: #{tpu_custom_call.1} parent=1 // pred_fallthru
      _
    // Predicated region
    $region10: #{tpu_custom_call.1} parent=1 // pred_check
      _
    $region11: #{tpu_custom_call.1} parent=1 // pred_check_branch
      %19 = sbr.rel (0) target = $region13
    $region12: #{tpu_custom_call.1} parent=1 // pred_region
      _
    $region13: #{tpu_custom_call.1} parent=1 // pred_fallthru
      _
    // Predicated region
    $region14: #{tpu_custom_call.1} parent=1 // pred_check
      _
    $region15: #{tpu_custom_call.1} parent=1 // pred_check_branch
      %21 = sbr.rel (0) target = $region17
    $region16: #{tpu_custom_call.1} parent=1 // pred_region
      _
    $region17: #{tpu_custom_call.1} parent=1 // pred_fallthru
      _
    // Predicated region
    $region18: #{tpu_custom_call.1} parent=1 // pred_check
      _
    $region19: #{tpu_custom_call.1} parent=1 // pred_check_branch
      %23 = sbr.rel (0) target = $region21
    $region20: #{tpu_custom_call.1} parent=1 // pred_region
      _
    $region21: #{tpu_custom_call.1} parent=1 // pred_fallthru
      _
    // Predicated region
    $region22: #{tpu_custom_call.1} parent=1 // pred_check
      _
    $region23: #{tpu_custom_call.1} parent=1 // pred_check_branch
      %25 = sbr.rel (0) target = $region25
    $region24: #{tpu_custom_call.1} parent=1 // pred_region
      _
    $region25: #{tpu_custom_call.1} parent=1 // pred_fallthru
      _
    // Predicated region
    $region26: #{tpu_custom_call.1} parent=1 // pred_check
      _
    $region27: #{tpu_custom_call.1} parent=1 // pred_check_branch
      %27 = sbr.rel (0) target = $region29
    $region28: #{tpu_custom_call.1} parent=1 // pred_region
      _
    $region29: #{tpu_custom_call.1} parent=1 // pred_fallthru
      _
    // Predicated region
    $region30: #{tpu_custom_call.1} parent=1 // pred_check
      _
    $region31: #{tpu_custom_call.1} parent=1 // pred_check_branch
      %29 = sbr.rel (0) target = $region33
    $region32: #{tpu_custom_call.1} parent=1 // pred_region
      _
    $region33: #{tpu_custom_call.1} parent=1 // pred_fallthru
      _
    %v31 = vld [vmem:[%s0] sm:$0x3]
    %v32 = vunpack.c.0.s8 %v31
    %v33 = vcvt.s32.f32 %v32
    %v34 = vsub.f32 %v33, 1.0
    %v35 = vmul.f32 %v34, 1e+30
    %v36 = vld [vmem:[%s1] sm:$0xff]
    %v37 = vld [vmem:[%s2] sm:$0xff]
    %v38 = vld [vmem:[%s6] sm:$0x3]
    %v39 = vld [vmem:[%s5] sm:$0x1]
    %41 = vset.pattern.permute.xlu0 0
    %42 = vperm.xlu0 %41, %v37
    %v43 = vpop.permute.xlu0 %42
    %v45 = vlaneseq
    %v46 = vshrl.u32 %v45, 7
    %v47 = vsub.s32 0, %v46
    %v48 = vrot.slane %v39, %v47
    %v49 = vadd.f32 %v43, %v48
    %v50 = vadd.f32 %v49, %v35
    %v51 = vld [vmem:[%s3] sm:$0x1]
    %53 = vset.pattern.permute.xlu0 0
    %54 = vperm.xlu0 %53, %v36
    %v55 = vpop.permute.xlu0 %54
    %v57 = vlaneseq
    %v58 = vshrl.u32 %v57, 7
    %v59 = vsub.s32 0, %v58
    %v60 = vrot.slane %v51, %v59
    %v61 = vadd.f32 %v55, %v60
    %v62 = vmax.f32 %v61, 0.0
    %s64 = vtos %v38
    %v65 = vstv %s64
    %v67 = vmul.f32 %v65, %v62
    %v68 = vadd.f32 %v50, %v67
    %v69 = vld [vmem:[%s3 + $0x1] sm:$0x1]
    %70 = vset.pattern.permute.xlu0 1
    %71 = vperm.xlu0 %70, %v36
    %v72 = vpop.permute.xlu0 %71
    %v74 = vlaneseq
    %v75 = vshrl.u32 %v74, 7
    %v76 = vsub.s32 0, %v75
    %v77 = vrot.slane %v69, %v76
    %v78 = vadd.f32 %v72, %v77
    %v79 = vmax.f32 %v78, 0.0
    %80 = vrot.lane.b32.xlu0 %v38, 127
    %v81 = vpop.permute.xlu0 %80
    %s82 = vtos %v81
    %v83 = vstv %s82
    %v85 = vmul.f32 %v83, %v79
    %v86 = vadd.f32 %v68, %v85
    %v87 = vld [vmem:[%s3 + $0x2] sm:$0x1]
    %88 = vset.pattern.permute.xlu0 2
    %89 = vperm.xlu0 %88, %v36
    %v90 = vpop.permute.xlu0 %89
    %v92 = vlaneseq
    %v93 = vshrl.u32 %v92, 7
    %v94 = vsub.s32 0, %v93
    %v95 = vrot.slane %v87, %v94
    %v96 = vadd.f32 %v90, %v95
    %v97 = vmax.f32 %v96, 0.0
    %98 = vrot.lane.b32.xlu0 %v38, 126
    %v99 = vpop.permute.xlu0 %98
    %s100 = vtos %v99
    %v101 = vstv %s100
    %v103 = vmul.f32 %v101, %v97
    %v104 = vadd.f32 %v86, %v103
    %v105 = vld [vmem:[%s3 + $0x3] sm:$0x1]
    %106 = vset.pattern.permute.xlu0 3
    %107 = vperm.xlu0 %106, %v36
    %v108 = vpop.permute.xlu0 %107
    %v110 = vlaneseq
    %v111 = vshrl.u32 %v110, 7
    %v112 = vsub.s32 0, %v111
    %v113 = vrot.slane %v105, %v112
    %v114 = vadd.f32 %v108, %v113
    %v115 = vmax.f32 %v114, 0.0
    %116 = vrot.lane.b32.xlu0 %v38, 125
    %v117 = vpop.permute.xlu0 %116
    %s118 = vtos %v117
    %v119 = vstv %s118
    %v121 = vmul.f32 %v119, %v115
    %v122 = vadd.f32 %v104, %v121
    %v123 = vld [vmem:[%s3 + $0x4] sm:$0x1]
    %124 = vset.pattern.permute.xlu0 4
    %125 = vperm.xlu0 %124, %v36
    %v126 = vpop.permute.xlu0 %125
    %v128 = vlaneseq
    %v129 = vshrl.u32 %v128, 7
    %v130 = vsub.s32 0, %v129
    %v131 = vrot.slane %v123, %v130
    %v132 = vadd.f32 %v126, %v131
    %v133 = vmax.f32 %v132, 0.0
    %134 = vrot.lane.b32.xlu0 %v38, 124
    %v135 = vpop.permute.xlu0 %134
    %s136 = vtos %v135
    %v137 = vstv %s136
    %v139 = vmul.f32 %v137, %v133
    %v140 = vadd.f32 %v122, %v139
    %v141 = vld [vmem:[%s3 + $0x5] sm:$0x1]
    %142 = vset.pattern.permute.xlu0 5
    %143 = vperm.xlu0 %142, %v36
    %v144 = vpop.permute.xlu0 %143
    %v146 = vlaneseq
    %v147 = vshrl.u32 %v146, 7
    %v148 = vsub.s32 0, %v147
    %v149 = vrot.slane %v141, %v148
    %v150 = vadd.f32 %v144, %v149
    %v151 = vmax.f32 %v150, 0.0
    %152 = vrot.lane.b32.xlu0 %v38, 123
    %v153 = vpop.permute.xlu0 %152
    %s154 = vtos %v153
    %v155 = vstv %s154
    %v157 = vmul.f32 %v155, %v151
    %v158 = vadd.f32 %v140, %v157
    %v159 = vld [vmem:[%s3 + $0x6] sm:$0x1]
    %160 = vset.pattern.permute.xlu0 6
    %161 = vperm.xlu0 %160, %v36
    %v162 = vpop.permute.xlu0 %161
    %v164 = vlaneseq
    %v165 = vshrl.u32 %v164, 7
    %v166 = vsub.s32 0, %v165
    %v167 = vrot.slane %v159, %v166
    %v168 = vadd.f32 %v162, %v167
    %v169 = vmax.f32 %v168, 0.0
    %170 = vrot.lane.b32.xlu0 %v38, 122
    %v171 = vpop.permute.xlu0 %170
    %s172 = vtos %v171
    %v173 = vstv %s172
    %v175 = vmul.f32 %v173, %v169
    %v176 = vadd.f32 %v158, %v175
    %v177 = vld [vmem:[%s3 + $0x7] sm:$0x1]
    %178 = vset.pattern.permute.xlu0 7
    %179 = vperm.xlu0 %178, %v36
    %v180 = vpop.permute.xlu0 %179
    %v182 = vlaneseq
    %v183 = vshrl.u32 %v182, 7
    %v184 = vsub.s32 0, %v183
    %v185 = vrot.slane %v177, %v184
    %v186 = vadd.f32 %v180, %v185
    %v187 = vmax.f32 %v186, 0.0
    %188 = vrot.lane.b32.xlu0 %v38, 121
    %v189 = vpop.permute.xlu0 %188
    %s190 = vtos %v189
    %v191 = vstv %s190
    %v193 = vmul.f32 %v191, %v187
    %v194 = vadd.f32 %v176, %v193
    %vm195 = vcmask 64512
    %v196 = vsel %vm195, %v194, -inf
    %197 = vmax.xlane.f32.xlu0 %v196
    %v198 = vpop.xlane.xlu0 %197
    %v199 = vsub.f32 %v194, %v198
    %v200 = vmul.f32 %v199, 1.442695
    %v201 = vpow.pop %v200
    %v202 = vsel %vm195, %v201, 0.0
    %203 = vadd.xlane.f32.xlu0 %v202
    %v204 = vpop.xlane.xlu0 %203
    %v205 = vrcp.pop %v204
    %v206 = vmul.f32 %v201, %v205
    %v207 = vpack.c.bf16 %v206, %v206
    %v208 = vld [vmem:[%s4] sm:$0xf]
    %v210 = vsel %vm195, %v207, 0
    %vm212 = vcmask 1043456
    %v214 = vsel %vm212, %v208, 0
    %216 = vmatprep.subr.bf16.mxu0 0
    %217 = vmatpush1.bf16.msra.mxu0 %v214
    %218 = vmatprep.subr.bf16.mxu0 0
    %219 = vmatpush1.bf16.msra.mxu0 0
    %220 = vmatprep.subr.bf16.mxu0 0
    %221 = vmatpush1.bf16.msra.mxu0 0
    %222 = vmatprep.subr.bf16.mxu0 0
    %223 = vmatpush1.bf16.msra.mxu0 0
    %224 = vmatprep.subr.bf16.mxu0 0
    %225 = vmatpush1.bf16.msra.mxu0 0
    %226 = vmatprep.subr.bf16.mxu0 0
    %227 = vmatpush1.bf16.msra.mxu0 0
    %228 = vmatprep.subr.bf16.mxu0 0
    %229 = vmatpush1.bf16.msra.mxu0 0
    %230 = vmatprep.subr.bf16.mxu0 0
    %231 = vmatpush1.bf16.msra.mxu0 0
    %232 = vmatprep.subr.bf16.mxu0 0
    %233 = vmatpush1.bf16.msra.mxu0 0
    %234 = vmatprep.subr.bf16.mxu0 0
    %235 = vmatpush1.bf16.msra.mxu0 0
    %236 = vmatprep.subr.bf16.mxu0 0
    %237 = vmatpush1.bf16.msra.mxu0 0
    %238 = vmatprep.subr.bf16.mxu0 0
    %239 = vmatpush1.bf16.msra.mxu0 0
    %240 = vmatprep.subr.bf16.mxu0 0
    %241 = vmatpush1.bf16.msra.mxu0 0
    %242 = vmatprep.subr.bf16.mxu0 0
    %243 = vmatpush1.bf16.msra.mxu0 0
    %244 = vmatprep.subr.bf16.mxu0 0
    %245 = vmatpush1.bf16.msra.mxu0 0
    %246 = vmatprep.subr.bf16.mxu0 0
    %247 = vmatpush1.bf16.msra.mxu0 0
    %248 = vmatprep.mubr.bf16.mxu0 0
    %249 = vmatmul.mubr.bf16.gmra.mrb[0].mxu0 %v210
    %v250 = vpop.f32.mrb[0].mxu0
    %v251 = vadd.f32 0.0, %v250
    %v252 = vpop.f32.mrb[0].mxu0
    %v253 = vpop.f32.mrb[0].mxu0
    %v254 = vpop.f32.mrb[0].mxu0
    %255 = vdwg.mxu0
    %v256 = vld [vmem:[%s5 + $0x1] sm:$0x1]
    %257 = vset.pattern.permute.xlu0 1
    %258 = vperm.xlu0 %257, %v37
    %v259 = vpop.permute.xlu0 %258
    %v261 = vlaneseq
    %v262 = vshrl.u32 %v261, 7
    %v263 = vsub.s32 0, %v262
    %v264 = vrot.slane %v256, %v263
    %v265 = vadd.f32 %v259, %v264
    %v266 = vadd.f32 %v265, %v35
    %v267 = vld [vmem:[%s3 + $0x8] sm:$0x1]
    %268 = vset.pattern.permute.xlu0 8
    %269 = vperm.xlu0 %268, %v36
    %v270 = vpop.permute.xlu0 %269
    %v272 = vlaneseq
    %v273 = vshrl.u32 %v272, 7
    %v274 = vsub.s32 0, %v273
    %v275 = vrot.slane %v267, %v274
    %v276 = vadd.f32 %v270, %v275
    %v277 = vmax.f32 %v276, 0.0
    %v278 = vrot.slane %v38, 1
    %s279 = vtos %v278
    %v280 = vstv %s279
    %v282 = vmul.f32 %v280, %v277
    %v283 = vadd.f32 %v266, %v282
    %v284 = vld [vmem:[%s3 + $0x9] sm:$0x1]
    %285 = vset.pattern.permute.xlu0 9
    %286 = vperm.xlu0 %285, %v36
    %v287 = vpop.permute.xlu0 %286
    %v289 = vlaneseq
    %v290 = vshrl.u32 %v289, 7
    %v291 = vsub.s32 0, %v290
    %v292 = vrot.slane %v284, %v291
    %v293 = vadd.f32 %v287, %v292
    %v294 = vmax.f32 %v293, 0.0
    %295 = vrot.lane.b32.xlu0 %v278, 127
    %v296 = vpop.permute.xlu0 %295
    %s297 = vtos %v296
    %v298 = vstv %s297
    %v300 = vmul.f32 %v298, %v294
    %v301 = vadd.f32 %v283, %v300
    %v302 = vld [vmem:[%s3 + $0xa] sm:$0x1]
    %303 = vset.pattern.permute.xlu0 10
    %304 = vperm.xlu0 %303, %v36
    %v305 = vpop.permute.xlu0 %304
    %v307 = vlaneseq
    %v308 = vshrl.u32 %v307, 7
    %v309 = vsub.s32 0, %v308
    %v310 = vrot.slane %v302, %v309
    %v311 = vadd.f32 %v305, %v310
    %v312 = vmax.f32 %v311, 0.0
    %313 = vrot.lane.b32.xlu0 %v278, 126
    %v314 = vpop.permute.xlu0 %313
    %s315 = vtos %v314
    %v316 = vstv %s315
    %v318 = vmul.f32 %v316, %v312
    %v319 = vadd.f32 %v301, %v318
    %v320 = vld [vmem:[%s3 + $0xb] sm:$0x1]
    %321 = vset.pattern.permute.xlu0 11
    %322 = vperm.xlu0 %321, %v36
    %v323 = vpop.permute.xlu0 %322
    %v325 = vlaneseq
    %v326 = vshrl.u32 %v325, 7
    %v327 = vsub.s32 0, %v326
    %v328 = vrot.slane %v320, %v327
    %v329 = vadd.f32 %v323, %v328
    %v330 = vmax.f32 %v329, 0.0
    %331 = vrot.lane.b32.xlu0 %v278, 125
    %v332 = vpop.permute.xlu0 %331
    %s333 = vtos %v332
    %v334 = vstv %s333
    %v336 = vmul.f32 %v334, %v330
    %v337 = vadd.f32 %v319, %v336
    %v338 = vld [vmem:[%s3 + $0xc] sm:$0x1]
    %339 = vset.pattern.permute.xlu0 12
    %340 = vperm.xlu0 %339, %v36
    %v341 = vpop.permute.xlu0 %340
    %v343 = vlaneseq
    %v344 = vshrl.u32 %v343, 7
    %v345 = vsub.s32 0, %v344
    %v346 = vrot.slane %v338, %v345
    %v347 = vadd.f32 %v341, %v346
    %v348 = vmax.f32 %v347, 0.0
    %349 = vrot.lane.b32.xlu0 %v278, 124
    %v350 = vpop.permute.xlu0 %349
    %s351 = vtos %v350
    %v352 = vstv %s351
    %v354 = vmul.f32 %v352, %v348
    %v355 = vadd.f32 %v337, %v354
    %v356 = vld [vmem:[%s3 + $0xd] sm:$0x1]
    %357 = vset.pattern.permute.xlu0 13
    %358 = vperm.xlu0 %357, %v36
    %v359 = vpop.permute.xlu0 %358
    %v361 = vlaneseq
    %v362 = vshrl.u32 %v361, 7
    %v363 = vsub.s32 0, %v362
    %v364 = vrot.slane %v356, %v363
    %v365 = vadd.f32 %v359, %v364
    %v366 = vmax.f32 %v365, 0.0
    %367 = vrot.lane.b32.xlu0 %v278, 123
    %v368 = vpop.permute.xlu0 %367
    %s369 = vtos %v368
    %v370 = vstv %s369
    %v372 = vmul.f32 %v370, %v366
    %v373 = vadd.f32 %v355, %v372
    %v374 = vld [vmem:[%s3 + $0xe] sm:$0x1]
    %375 = vset.pattern.permute.xlu0 14
    %376 = vperm.xlu0 %375, %v36
    %v377 = vpop.permute.xlu0 %376
    %v379 = vlaneseq
    %v380 = vshrl.u32 %v379, 7
    %v381 = vsub.s32 0, %v380
    %v382 = vrot.slane %v374, %v381
    %v383 = vadd.f32 %v377, %v382
    %v384 = vmax.f32 %v383, 0.0
    %385 = vrot.lane.b32.xlu0 %v278, 122
    %v386 = vpop.permute.xlu0 %385
    %s387 = vtos %v386
    %v388 = vstv %s387
    %v390 = vmul.f32 %v388, %v384
    %v391 = vadd.f32 %v373, %v390
    %v392 = vld [vmem:[%s3 + $0xf] sm:$0x1]
    %393 = vset.pattern.permute.xlu0 15
    %394 = vperm.xlu0 %393, %v36
    %v395 = vpop.permute.xlu0 %394
    %v397 = vlaneseq
    %v398 = vshrl.u32 %v397, 7
    %v399 = vsub.s32 0, %v398
    %v400 = vrot.slane %v392, %v399
    %v401 = vadd.f32 %v395, %v400
    %v402 = vmax.f32 %v401, 0.0
    %403 = vrot.lane.b32.xlu0 %v278, 121
    %v404 = vpop.permute.xlu0 %403
    %s405 = vtos %v404
    %v406 = vstv %s405
    %v408 = vmul.f32 %v406, %v402
    %v409 = vadd.f32 %v391, %v408
    %v410 = vsel %vm195, %v409, -inf
    %411 = vmax.xlane.f32.xlu0 %v410
    %v412 = vpop.xlane.xlu0 %411
    %v413 = vsub.f32 %v409, %v412
    %v414 = vmul.f32 %v413, 1.442695
    %v415 = vpow.pop %v414
    %v416 = vsel %vm195, %v415, 0.0
    %417 = vadd.xlane.f32.xlu0 %v416
    %v418 = vpop.xlane.xlu0 %417
    %v419 = vrcp.pop %v418
    %v420 = vmul.f32 %v415, %v419
    %v421 = vpack.c.bf16 %v420, %v420
    %v423 = vunpack.c.l.b16 %v208
    %v424 = vpack.c.b16 %v423, %v423
    %425 = vrot.lane.b32.xlu0 %v424, 120
    %v426 = vpop.permute.xlu0 %425
    %v428 = vsel %vm195, %v421, 0
    %v431 = vsel %vm212, %v426, 0
    %433 = vmatprep.subr.bf16.mxu0 0
    %434 = vmatpush1.bf16.msra.mxu0 %v431
    %435 = vmatprep.subr.bf16.mxu0 0
    %436 = vmatpush1.bf16.msra.mxu0 0
    %437 = vmatprep.subr.bf16.mxu0 0
    %438 = vmatpush1.bf16.msra.mxu0 0
    %439 = vmatprep.subr.bf16.mxu0 0
    %440 = vmatpush1.bf16.msra.mxu0 0
    %441 = vmatprep.subr.bf16.mxu0 0
    %442 = vmatpush1.bf16.msra.mxu0 0
    %443 = vmatprep.subr.bf16.mxu0 0
    %444 = vmatpush1.bf16.msra.mxu0 0
    %445 = vmatprep.subr.bf16.mxu0 0
    %446 = vmatpush1.bf16.msra.mxu0 0
    %447 = vmatprep.subr.bf16.mxu0 0
    %448 = vmatpush1.bf16.msra.mxu0 0
    %449 = vmatprep.subr.bf16.mxu0 0
    %450 = vmatpush1.bf16.msra.mxu0 0
    %451 = vmatprep.subr.bf16.mxu0 0
    %452 = vmatpush1.bf16.msra.mxu0 0
    %453 = vmatprep.subr.bf16.mxu0 0
    %454 = vmatpush1.bf16.msra.mxu0 0
    %455 = vmatprep.subr.bf16.mxu0 0
    %456 = vmatpush1.bf16.msra.mxu0 0
    %457 = vmatprep.subr.bf16.mxu0 0
    %458 = vmatpush1.bf16.msra.mxu0 0
    %459 = vmatprep.subr.bf16.mxu0 0
    %460 = vmatpush1.bf16.msra.mxu0 0
    %461 = vmatprep.subr.bf16.mxu0 0
    %462 = vmatpush1.bf16.msra.mxu0 0
    %463 = vmatprep.subr.bf16.mxu0 0
    %464 = vmatpush1.bf16.msra.mxu0 0
    %465 = vmatprep.mubr.bf16.mxu0 0
    %466 = vmatmul.mubr.bf16.gmra.mrb[0].mxu0 %v428
    %v467 = vpop.f32.mrb[0].mxu0
    %v468 = vadd.f32 0.0, %v467
    %v469 = vpop.f32.mrb[0].mxu0
    %v470 = vpop.f32.mrb[0].mxu0
    %v471 = vpop.f32.mrb[0].mxu0
    %472 = vdwg.mxu0
    %474 = vrot.lane.b32.xlu0 %v468, 8
    %v475 = vpop.permute.xlu0 %474
    %v477 = vsel %vm195, %v251, %v475
    %v478 = vld [vmem:[%s7] sm:$0x1]
    %v480 = vlaneseq
    %v481 = vshrl.u32 %v480, 7
    %v482 = vsub.s32 0, %v481
    %v483 = vrot.slane %v478, %v482
    %v485 = vadd.f32 %v477, %v483
    %v486 = vxor.u32 %v485, 2147483648
    %v487 = vmul.f32 %v486, 1.442695
    %v488 = vpow.pop %v487
    %v489 = vadd.f32 %v488, 1.0
    %v490 = vrcp.pop %v489
    %v491 = vmul.f32 1.0, %v490
    %vm492 = vcmask 130048
    %493 = vst.msk [vmem:[#allocation2] sm:$0xff] %vm492, %v491
    // Predicated region
    $region34: #{tpu_custom_call.1} parent=1 // pred_check
      _
    $region35: #{tpu_custom_call.1} parent=1 // pred_check_branch
      %495 = sbr.rel (0) target = $region37
    $region36: #{tpu_custom_call.1} parent=1 // pred_region
      %s497 = ssub.s32 128, 128
      %498 = vsyncadd [#allocation3], %s497
      %s500 = sshll.u32 [#allocation2], 4
      %s501 = int_to_ptr.vmem [resolvable:$true] %s500
      %503 = dma.vmem_to_hbm [thread:$0]  %s501, 128, %s8, [#allocation3]
    $region37: #{tpu_custom_call.1} parent=1 // pred_fallthru
      _
    // Predicated region
    $region38: #{tpu_custom_call.1} parent=1 // pred_check
      _
    $region39: #{tpu_custom_call.1} parent=1 // pred_check_branch
      %505 = sbr.rel (0) target = $region41
    $region40: #{tpu_custom_call.1} parent=1 // pred_region
      %506 = dma.done [#allocation3], 128
    $region41: #{tpu_custom_call.1} parent=1 // pred_fallthru
      _
    %507 = vsyncpa [#allocation3], 1

</llo_original>
